<compile_context>
chip_gen: v7x
topology: tpu7x:2x2x1
jax: 0.10.0
libtpu: 0.0.40
codegen_flags: <defaults>
</compile_context>

<pallas_src>
import functools

import jax
import jax.numpy as jnp
from jax.experimental import pallas as pl
from jax.experimental.pallas import tpu as pltpu


def _attention2_kernel(x_ref, w1_ref, b1_ref, w2_ref, b2_ref, out_ref, *, k_dim, is_norm):
    # x streamed f32; cast to bf16 in-kernel (VPU cast hides under the DMA) for the MXU.
    x_bf16 = x_ref[...].astype(jnp.bfloat16)                       # (tile_n, L)
    h = jnp.dot(x_bf16, w1_ref[...], preferred_element_type=jnp.float32)  # (tile_n, D) f32
    h = jnp.tanh(h + b1_ref[...])                                  # bias + tanh in f32

    # Second contraction in f32 (K is tiny, cost is negligible; avoids double rounding).
    # Contract over D with h as LHS so no XLU transpose of the big activation is needed;
    # only the tiny (tile_n, K) result is transposed into the lane-dense (K, tile_n) layout.
    a_col = jnp.dot(h, w2_ref[...], preferred_element_type=jnp.float32)   # (tile_n, K) f32
    a = jnp.transpose(a_col)                                       # (K, tile_n) f32

    # b2 lives in SMEM; K is a small static int so this unrolls to scalar adds.
    if k_dim == 1:
        a = a + b2_ref[0]
    else:
        bias = jnp.concatenate(
            [jnp.full((1, 1), b2_ref[i], dtype=a.dtype) for i in range(k_dim)], axis=0)
        a = a + bias

    if is_norm:
        a = jax.nn.sigmoid(a)
    out_ref[...] = a.astype(out_ref.dtype)


def _choose_tile_n(n, max_tile):
    """Pick the N-tile: multiple of 128 (lane-dense (K, tile_n) output and aligned
    (tile_n, L) x blocks), <= max_tile (VMEM-safe f32 double-buffering on all generations),
    and an even number of grid steps for large N (balances v7x's 2 TensorCores)."""
    max_tile = max(128, (max_tile // 128) * 128)
    if n <= 256:
        return n  # single full-array tile (block dims == array dims is always legal)
    n_tiles = max(2, -(-n // max_tile))
    if n_tiles % 2:
        n_tiles += 1
    tile = -(-n // n_tiles)          # ceil
    tile = -(-tile // 128) * 128     # round up to a multiple of 128
    return min(tile, max_tile)


def attention2_forward(x, w1, b1, w2, b2, isNorm=True, max_tile_n=2048):
    """x: (N, L) f32; w1: (L, D); b1: (1, D) or (D,); w2: (D, K); b2: (1, K) or (K,).
    Returns A with shape (K, N), matching the PyTorch module (transpose + optional sigmoid)."""
    N, L = x.shape
    D = w1.shape[1]
    K = w2.shape[1]

    tile_n = _choose_tile_n(N, max_tile_n)
    grid = (pl.cdiv(N, tile_n),)

    # Resident operands: w1 in bf16 (MXU), w2/b1 in f32, b2 as an SMEM scalar vector.
    w1_bf16 = w1.astype(jnp.bfloat16)                 # (L, D)
    w2_f32 = w2.astype(jnp.float32)                   # (D, K)
    b1_f32 = b1.reshape(1, D).astype(jnp.float32)     # (1, D)
    b2_f32 = b2.reshape(K).astype(jnp.float32)        # (K,) -> SMEM

    flops = 2 * N * L * D + 2 * N * D * K
    transcendentals = N * D + (N * K if isNorm else 0)
    bytes_accessed = (4 * N * L) + (2 * L * D) + (4 * D) + (4 * D * K) + (4 * K) + (4 * K * N)

    out = pl.pallas_call(
        functools.partial(_attention2_kernel, k_dim=K, is_norm=isNorm),
        out_shape=jax.ShapeDtypeStruct((K, N), x.dtype),
        grid=grid,
        in_specs=[
            pl.BlockSpec((tile_n, L), lambda i: (i, 0)),   # x: streamed f32 over N
            pl.BlockSpec((L, D), lambda i: (0, 0)),        # w1: resident (bf16)
            pl.BlockSpec((1, D), lambda i: (0, 0)),        # b1: resident (f32)
            pl.BlockSpec((D, K), lambda i: (0, 0)),        # w2: resident (f32)
            pl.BlockSpec(memory_space=pltpu.MemorySpace.SMEM),  # b2: SMEM scalars
        ],
        out_specs=pl.BlockSpec((K, tile_n), lambda i: (0, i)),  # lane-dense (K, N)
        compiler_params=pltpu.CompilerParams(
            dimension_semantics=("parallel",),
        ),
        cost_estimate=pl.CostEstimate(
            flops=flops,
            transcendentals=transcendentals,
            bytes_accessed=bytes_accessed,
        ),
    )(x, w1_bf16, b1_f32, w2_f32, b2_f32)

    return out  # already (K, N); torch.transpose is absorbed into the output layout

    # TODO(synk): if this runs per DTFD bag with small N, stack bags and add a leading
    # "parallel" bag axis to the grid (or vmap bags into one pallas_call) so the pipeline
    # has steps to overlap and megacore has work to shard.


def make_params(key, L, D, K, dtype=jnp.float32):
    """Deterministic synthetic parameters (shapes match nn.Linear(L,D), nn.Linear(D,K))."""
    k1, k2, k3, k4 = jax.random.split(key, 4)
    # Stored pre-transposed relative to torch's (out, in) convention.
    w1 = jax.random.normal(k1, (L, D), dtype) * (1.0 / jnp.sqrt(L))
    b1 = jax.random.normal(k2, (1, D), dtype) * 0.01
    w2 = jax.random.normal(k3, (D, K), dtype) * (1.0 / jnp.sqrt(D))
    b2 = jax.random.normal(k4, (1, K), dtype) * 0.01
    return w1, b1, w2, b2


def _reference(x, w1, b1, w2, b2, isNorm):
    a = jnp.tanh(x @ w1 + b1.reshape(1, -1)) @ w2 + b2.reshape(1, -1)
    a = a.T
    return jax.nn.sigmoid(a) if isNorm else a


if __name__ == "__main__":
    key = jax.random.PRNGKey(0)
    kx, kp, kx2 = jax.random.split(key, 3)

    # Small, module-consistent shapes: N instances of width L=512, D=128, K=1.
    N, L, D, K = 16, 512, 128, 1
    x = jax.random.normal(kx, (N, L), jnp.float32)
    w1, b1, w2, b2 = make_params(kp, L, D, K)

    A = attention2_forward(x, w1, b1, w2, b2, isNorm=True)
    A = jax.block_until_ready(A)
    ref = _reference(x, w1, b1, w2, b2, True)
    assert A.shape == (K, N), A.shape
    # bf16 first matmul (f32 accumulation, f32 second contraction) vs f32 reference.
    assert jnp.allclose(A, ref, atol=2e-2, rtol=2e-2), float(jnp.max(jnp.abs(A - ref)))

    # Multi-tile path (2 grid steps of 256 rows, masked tail) + isNorm=False branch.
    N2 = 300
    x2 = jax.random.normal(kx2, (N2, L), jnp.float32)
    A2 = attention2_forward(x2, w1, b1, w2, b2, isNorm=False)
    A2 = jax.block_until_ready(A2)
    ref2 = _reference(x2, w1, b1, w2, b2, False)
    assert A2.shape == (K, N2), A2.shape
    assert jnp.allclose(A2, ref2, atol=2e-2, rtol=2e-2), float(jnp.max(jnp.abs(A2 - ref2)))

    print("KERNEL_OK")
</pallas_src>

<mosaic_0001>
module attributes {stable_mosaic.version = 11 : i64} {
  func.func @_attention2_kernel(%arg0: i32, %arg1: memref<16x512xf32, #tpu.memory_space<vmem>>, %arg2: memref<512x128xbf16, #tpu.memory_space<vmem>>, %arg3: memref<1x128xf32, #tpu.memory_space<vmem>>, %arg4: memref<128x1xf32, #tpu.memory_space<vmem>>, %arg5: memref<1xf32, #tpu.memory_space<smem>>, %arg6: memref<1x16xf32, #tpu.memory_space<vmem>>) attributes {dimension_semantics = [#tpu.dimension_semantics<parallel>], iteration_bounds = array<i64: 1>, scalar_prefetch = 0 : i64, scratch_operands = 0 : i64, tpu.core_type = #tpu.core_type<tc>, window_params = [{transform_indices = @transform_0, window_bounds = array<i64: 16, 512>}, {pipeline_mode = #tpu.pipeline_mode<synchronous>, transform_indices = @transform_1, window_bounds = array<i64: 512, 128>}, {pipeline_mode = #tpu.pipeline_mode<synchronous>, transform_indices = @transform_2, window_bounds = array<i64: 1, 128>}, {pipeline_mode = #tpu.pipeline_mode<synchronous>, transform_indices = @transform_3, window_bounds = array<i64: 128, 1>}, {transform_indices = @transform_4, window_bounds = array<i64: 1>}, {transform_indices = @transform_5, window_bounds = array<i64: 1, 16>}]} {
    %c0 = arith.constant 0 : index
    %c0_0 = arith.constant 0 : index
    %0 = vector.load %arg1[%c0, %c0_0] : memref<16x512xf32, #tpu.memory_space<vmem>>, vector<16x512xf32>
    %1 = arith.truncf %0 : vector<16x512xf32> to vector<16x512xbf16>
    %c0_1 = arith.constant 0 : index
    %c0_2 = arith.constant 0 : index
    %2 = vector.load %arg2[%c0_1, %c0_2] : memref<512x128xbf16, #tpu.memory_space<vmem>>, vector<512x128xbf16>
    %cst = arith.constant dense<0.000000e+00> : vector<16x128xf32>
    %3 = tpu.matmul %1, %2, %cst {dimension_numbers = #tpu.dot_dimension_numbers<[1], [0], [0], [1], [0, 0, 1, 1], [], []>} : vector<16x512xbf16>, vector<512x128xbf16>, vector<16x128xf32> -> vector<16x128xf32>
    %c0_3 = arith.constant 0 : index
    %c0_4 = arith.constant 0 : index
    %4 = vector.load %arg3[%c0_3, %c0_4] : memref<1x128xf32, #tpu.memory_space<vmem>>, vector<1x128xf32>
    %5 = vector.broadcast %4 : vector<1x128xf32> to vector<16x128xf32>
    %6 = arith.addf %3, %5 : vector<16x128xf32>
    %7 = math.tanh %6 : vector<16x128xf32>
    %c0_5 = arith.constant 0 : index
    %c0_6 = arith.constant 0 : index
    %8 = vector.load %arg4[%c0_5, %c0_6] : memref<128x1xf32, #tpu.memory_space<vmem>>, vector<128x1xf32>
    %cst_7 = arith.constant dense<0.000000e+00> : vector<16x1xf32>
    %9 = tpu.matmul %7, %8, %cst_7 {dimension_numbers = #tpu.dot_dimension_numbers<[1], [0], [0], [1], [0, 0, 1, 1], [], []>} : vector<16x128xf32>, vector<128x1xf32>, vector<16x1xf32> -> vector<16x1xf32>
    %10 = tpu.transpose %9, [1, 0] : vector<16x1xf32> -> vector<1x16xf32>
    %c0_8 = arith.constant 0 : index
    %11 = memref.load %arg5[%c0_8] : memref<1xf32, #tpu.memory_space<smem>>
    %12 = vector.broadcast %11 : f32 to vector<1x16xf32>
    %13 = arith.addf %10, %12 : vector<1x16xf32>
    %14 = arith.negf %13 : vector<1x16xf32>
    %15 = math.exp %14 : vector<1x16xf32>
    %cst_9 = arith.constant 1.000000e+00 : f32
    %16 = vector.broadcast %cst_9 : f32 to vector<1x16xf32>
    %17 = arith.addf %16, %15 : vector<1x16xf32>
    %18 = arith.divf %16, %17 : vector<1x16xf32>
    %c0_10 = arith.constant 0 : index
    %c0_11 = arith.constant 0 : index
    %19 = vector.load %arg6[%c0_10, %c0_11] : memref<1x16xf32, #tpu.memory_space<vmem>>, vector<1x16xf32>
    tpu.vector_store %arg6[%c0_10, %c0_11], %18 {strides = array<i32>} : memref<1x16xf32, #tpu.memory_space<vmem>>, vector<1x16xf32>,
    return
  }
  func.func @transform_0(%arg0: i32) -> (i32, i32) {
    %c0_i32 = arith.constant 0 : i32
    %c0_i32_0 = arith.constant 0 : i32
    return %arg0, %c0_i32 : i32, i32
  }
  func.func @transform_1(%arg0: i32) -> (i32, i32) {
    %c0_i32 = arith.constant 0 : i32
    %c0_i32_0 = arith.constant 0 : i32
    %c0_i32_1 = arith.constant 0 : i32
    return %c0_i32, %c0_i32_0 : i32, i32
  }
  func.func @transform_2(%arg0: i32) -> (i32, i32) {
    %c0_i32 = arith.constant 0 : i32
    %c0_i32_0 = arith.constant 0 : i32
    %c0_i32_1 = arith.constant 0 : i32
    return %c0_i32, %c0_i32_0 : i32, i32
  }
  func.func @transform_3(%arg0: i32) -> (i32, i32) {
    %c0_i32 = arith.constant 0 : i32
    %c0_i32_0 = arith.constant 0 : i32
    %c0_i32_1 = arith.constant 0 : i32
    return %c0_i32, %c0_i32_0 : i32, i32
  }
  func.func @transform_4(%arg0: i32) -> i32 {
    %c0_i32 = arith.constant 0 : i32
    %c0_i32_0 = arith.constant 0 : i32
    return %c0_i32 : i32
  }
  func.func @transform_5(%arg0: i32) -> (i32, i32) {
    %c0_i32 = arith.constant 0 : i32
    %c0_i32_0 = arith.constant 0 : i32
    return %c0_i32, %arg0 : i32, i32
  }
}

</mosaic_0001>

<llo_original>
// kernel: tpu_custom_call.1
$region0: #{tpu_custom_call.1}
  #allocation0 [shape = 'u32[]', space=smem, size = 0x4, offset = 0x4, fixed_abs, tag = 'smem constant byte address 0x4 - core index']
  #allocation1 [shape = 'u32[144,128]{1,0:T(1,128)}', space=vmem, size = 0x12000, scoped, tag = 'internal scratch']
  #allocation2 [shape = 'f32[1]{0:T(128)S(6)}', space=smem, size = 0x200, scoped, tag = 'scoped memory for tpu_custom_call.1']
  %s0 = inlined_call_operand.vmem [shape: f32[16,512], index: 0, kind: input, shape index: {}]
  %s1 = inlined_call_operand.hbm [shape: bf16[512,128], index: 1, kind: input, shape index: {}]
  %s2 = inlined_call_operand.vmem [shape: f32[1,128], index: 2, kind: input, shape index: {}]
  %s3 = inlined_call_operand.vmem [shape: f32[128,1], index: 3, kind: input, shape index: {}]
  %s4 = inlined_call_operand.<no memory space> [shape: f32[1], index: 4, kind: input, shape index: {}]
  %s5 = inlined_call_operand.hbm [shape: f32[1,16], index: 5, kind: output, shape index: {}]
  %s6 = sld [smem:[#allocation0]]
  $region34: #{tpu_custom_call.1} parent=0
    _
  %s8 = ssub.s32 1, %s6
  %s9 = scalar_select 0, %s8, %s6
  %10 = sst [smem:[#allocation2]] %s4
  $region1: #{tpu_custom_call.1} parent=0
    #allocation3 [shape = 'u8[131072]{0}', space=vmem, size = 0x20000, scoped, tag = 'input window, operand 1, single buffered']
    #allocation4 [shape = 's32[1]{0}', space=sflag, size = 0x4, scoped, tag = 'scoped memory for tpu_custom_call.1']
    #allocation5 [shape = 's32[1]{0}', space=sflag, size = 0x4, scoped, tag = 'scoped memory for tpu_custom_call.1']
    #allocation6 [shape = 'u8[512]{0}', space=vmem, size = 0x400, scoped, tag = 'output window, operand 0, single buffered']
    %11 = vsyncpa [#allocation4], 0
    %12 = vsyncpa [#allocation5], 0
    // Predicated region
    $region2: #{tpu_custom_call.1} parent=1 // pred_check
      _
    $region3: #{tpu_custom_call.1} parent=1 // pred_check_branch
      %14 = sbr.rel (0) target = $region5
    $region4: #{tpu_custom_call.1} parent=1 // pred_region
      _
    $region5: #{tpu_custom_call.1} parent=1 // pred_fallthru
      _
    // Predicated region
    $region6: #{tpu_custom_call.1} parent=1 // pred_check
      _
    $region7: #{tpu_custom_call.1} parent=1 // pred_check_branch
      %16 = sbr.rel (0) target = $region9
    $region8: #{tpu_custom_call.1} parent=1 // pred_region
      %s18 = ssub.s32 4096, 4096
      %19 = vsyncadd [#allocation4], %s18
      %s20 = sshll.u32 [#allocation3], 4
      %s21 = int_to_ptr.vmem [resolvable:$true] %s20
      %26 = dma.hbm_to_vmem [thread:$0]  %s1, 4096, %s21, [#allocation4], 64, 64, 4
    $region9: #{tpu_custom_call.1} parent=1 // pred_fallthru
      _
    // Predicated region
    $region10: #{tpu_custom_call.1} parent=1 // pred_check
      _
    $region11: #{tpu_custom_call.1} parent=1 // pred_check_branch
      %28 = sbr.rel (0) target = $region13
    $region12: #{tpu_custom_call.1} parent=1 // pred_region
      _
    $region13: #{tpu_custom_call.1} parent=1 // pred_fallthru
      _
    // Predicated region
    $region14: #{tpu_custom_call.1} parent=1 // pred_check
      _
    $region15: #{tpu_custom_call.1} parent=1 // pred_check_branch
      %30 = sbr.rel (0) target = $region17
    $region16: #{tpu_custom_call.1} parent=1 // pred_region
      _
    $region17: #{tpu_custom_call.1} parent=1 // pred_fallthru
      _
    // Predicated region
    $region18: #{tpu_custom_call.1} parent=1 // pred_check
      _
    $region19: #{tpu_custom_call.1} parent=1 // pred_check_branch
      %32 = sbr.rel (0) target = $region21
    $region20: #{tpu_custom_call.1} parent=1 // pred_region
      _
    $region21: #{tpu_custom_call.1} parent=1 // pred_fallthru
      _
    // Predicated region
    $region22: #{tpu_custom_call.1} parent=1 // pred_check
      _
    $region23: #{tpu_custom_call.1} parent=1 // pred_check_branch
      %34 = sbr.rel (0) target = $region25
    $region24: #{tpu_custom_call.1} parent=1 // pred_region
      %35 = dma.done [#allocation4], 4096
    $region25: #{tpu_custom_call.1} parent=1 // pred_fallthru
      _
    %v37 = vld [vmem:[%s0] sm:$0xff]
    %v38 = vld [vmem:[%s0 + $0x8] sm:$0xff]
    %v39 = vld [vmem:[%s0 + $0x10] sm:$0xff]
    %v40 = vld [vmem:[%s0 + $0x18] sm:$0xff]
    %v41 = vld [vmem:[%s0 + $0x20] sm:$0xff]
    %v42 = vld [vmem:[%s0 + $0x28] sm:$0xff]
    %v43 = vld [vmem:[%s0 + $0x30] sm:$0xff]
    %v44 = vld [vmem:[%s0 + $0x38] sm:$0xff]
    %v45 = vpack.c.bf16 %v41, %v37
    %v46 = vpack.c.bf16 %v42, %v38
    %v47 = vpack.c.bf16 %v43, %v39
    %v48 = vpack.c.bf16 %v44, %v40
    %v49 = vld [vmem:[#allocation3] sm:$0xf]
    %v50 = vld [vmem:[#allocation3 + $0x4] sm:$0xf]
    %v51 = vld [vmem:[#allocation3 + $0x8] sm:$0xf]
    %v52 = vld [vmem:[#allocation3 + $0xc] sm:$0xf]
    %v53 = vld [vmem:[#allocation3 + $0x10] sm:$0xf]
    %v54 = vld [vmem:[#allocation3 + $0x14] sm:$0xf]
    %v55 = vld [vmem:[#allocation3 + $0x18] sm:$0xf]
    %v56 = vld [vmem:[#allocation3 + $0x1c] sm:$0xf]
    %v57 = vld [vmem:[#allocation3 + $0x20] sm:$0xf]
    %v58 = vld [vmem:[#allocation3 + $0x24] sm:$0xf]
    %v59 = vld [vmem:[#allocation3 + $0x28] sm:$0xf]
    %v60 = vld [vmem:[#allocation3 + $0x2c] sm:$0xf]
    %v61 = vld [vmem:[#allocation3 + $0x30] sm:$0xf]
    %v62 = vld [vmem:[#allocation3 + $0x34] sm:$0xf]
    %v63 = vld [vmem:[#allocation3 + $0x38] sm:$0xf]
    %v64 = vld [vmem:[#allocation3 + $0x3c] sm:$0xf]
    %v65 = vld [vmem:[#allocation3 + $0x40] sm:$0xf]
    %v66 = vld [vmem:[#allocation3 + $0x44] sm:$0xf]
    %v67 = vld [vmem:[#allocation3 + $0x48] sm:$0xf]
    %v68 = vld [vmem:[#allocation3 + $0x4c] sm:$0xf]
    %v69 = vld [vmem:[#allocation3 + $0x50] sm:$0xf]
    %v70 = vld [vmem:[#allocation3 + $0x54] sm:$0xf]
    %v71 = vld [vmem:[#allocation3 + $0x58] sm:$0xf]
    %v72 = vld [vmem:[#allocation3 + $0x5c] sm:$0xf]
    %v73 = vld [vmem:[#allocation3 + $0x60] sm:$0xf]
    %v74 = vld [vmem:[#allocation3 + $0x64] sm:$0xf]
    %v75 = vld [vmem:[#allocation3 + $0x68] sm:$0xf]
    %v76 = vld [vmem:[#allocation3 + $0x6c] sm:$0xf]
    %v77 = vld [vmem:[#allocation3 + $0x70] sm:$0xf]
    %v78 = vld [vmem:[#allocation3 + $0x74] sm:$0xf]
    %v79 = vld [vmem:[#allocation3 + $0x78] sm:$0xf]
    %v80 = vld [vmem:[#allocation3 + $0x7c] sm:$0xf]
    %v81 = vld [vmem:[#allocation3 + $0x80] sm:$0xf]
    %v82 = vld [vmem:[#allocation3 + $0x84] sm:$0xf]
    %v83 = vld [vmem:[#allocation3 + $0x88] sm:$0xf]
    %v84 = vld [vmem:[#allocation3 + $0x8c] sm:$0xf]
    %v85 = vld [vmem:[#allocation3 + $0x90] sm:$0xf]
    %v86 = vld [vmem:[#allocation3 + $0x94] sm:$0xf]
    %v87 = vld [vmem:[#allocation3 + $0x98] sm:$0xf]
    %v88 = vld [vmem:[#allocation3 + $0x9c] sm:$0xf]
    %v89 = vld [vmem:[#allocation3 + $0xa0] sm:$0xf]
    %v90 = vld [vmem:[#allocation3 + $0xa4] sm:$0xf]
    %v91 = vld [vmem:[#allocation3 + $0xa8] sm:$0xf]
    %v92 = vld [vmem:[#allocation3 + $0xac] sm:$0xf]
    %v93 = vld [vmem:[#allocation3 + $0xb0] sm:$0xf]
    %v94 = vld [vmem:[#allocation3 + $0xb4] sm:$0xf]
    %v95 = vld [vmem:[#allocation3 + $0xb8] sm:$0xf]
    %v96 = vld [vmem:[#allocation3 + $0xbc] sm:$0xf]
    %v97 = vld [vmem:[#allocation3 + $0xc0] sm:$0xf]
    %v98 = vld [vmem:[#allocation3 + $0xc4] sm:$0xf]
    %v99 = vld [vmem:[#allocation3 + $0xc8] sm:$0xf]
    %v100 = vld [vmem:[#allocation3 + $0xcc] sm:$0xf]
    %v101 = vld [vmem:[#allocation3 + $0xd0] sm:$0xf]
    %v102 = vld [vmem:[#allocation3 + $0xd4] sm:$0xf]
    %v103 = vld [vmem:[#allocation3 + $0xd8] sm:$0xf]
    %v104 = vld [vmem:[#allocation3 + $0xdc] sm:$0xf]
    %v105 = vld [vmem:[#allocation3 + $0xe0] sm:$0xf]
    %v106 = vld [vmem:[#allocation3 + $0xe4] sm:$0xf]
    %v107 = vld [vmem:[#allocation3 + $0xe8] sm:$0xf]
    %v108 = vld [vmem:[#allocation3 + $0xec] sm:$0xf]
    %v109 = vld [vmem:[#allocation3 + $0xf0] sm:$0xf]
    %v110 = vld [vmem:[#allocation3 + $0xf4] sm:$0xf]
    %v111 = vld [vmem:[#allocation3 + $0xf8] sm:$0xf]
    %v112 = vld [vmem:[#allocation3 + $0xfc] sm:$0xf]
    %v113 = vld [vmem:[%s2] sm:$0x1]
    %v115 = vlaneseq
    %v116 = vshrl.u32 %v115, 7
    %v117 = vsub.s32 0, %v116
    %v118 = vrot.slane %v113, %v117
    %v184 = vunpack.c.l.b16 %v49
    %v185 = vunpack.c.l.b16 %v50
    %v186 = vunpack.c.l.b16 %v51
    %v187 = vunpack.c.l.b16 %v52
    %v188 = vunpack.c.l.b16 %v53
    %v189 = vunpack.c.l.b16 %v54
    %v190 = vunpack.c.l.b16 %v55
    %v191 = vunpack.c.l.b16 %v56
    %v192 = vunpack.c.l.b16 %v57
    %v193 = vunpack.c.l.b16 %v58
    %v194 = vunpack.c.l.b16 %v59
    %v195 = vunpack.c.l.b16 %v60
    %v196 = vunpack.c.l.b16 %v61
    %v197 = vunpack.c.l.b16 %v62
    %v198 = vunpack.c.l.b16 %v63
    %v199 = vunpack.c.l.b16 %v64
    %v200 = vunpack.c.l.b16 %v65
    %v201 = vunpack.c.l.b16 %v66
    %v202 = vunpack.c.l.b16 %v67
    %v203 = vunpack.c.l.b16 %v68
    %v204 = vunpack.c.l.b16 %v69
    %v205 = vunpack.c.l.b16 %v70
    %v206 = vunpack.c.l.b16 %v71
    %v207 = vunpack.c.l.b16 %v72
    %v208 = vunpack.c.l.b16 %v73
    %v209 = vunpack.c.l.b16 %v74
    %v210 = vunpack.c.l.b16 %v75
    %v211 = vunpack.c.l.b16 %v76
    %v212 = vunpack.c.l.b16 %v77
    %v213 = vunpack.c.l.b16 %v78
    %v214 = vunpack.c.l.b16 %v79
    %v215 = vunpack.c.l.b16 %v80
    %v216 = vunpack.c.l.b16 %v81
    %v217 = vunpack.c.l.b16 %v82
    %v218 = vunpack.c.l.b16 %v83
    %v219 = vunpack.c.l.b16 %v84
    %v220 = vunpack.c.l.b16 %v85
    %v221 = vunpack.c.l.b16 %v86
    %v222 = vunpack.c.l.b16 %v87
    %v223 = vunpack.c.l.b16 %v88
    %v224 = vunpack.c.l.b16 %v89
    %v225 = vunpack.c.l.b16 %v90
    %v226 = vunpack.c.l.b16 %v91
    %v227 = vunpack.c.l.b16 %v92
    %v228 = vunpack.c.l.b16 %v93
    %v229 = vunpack.c.l.b16 %v94
    %v230 = vunpack.c.l.b16 %v95
    %v231 = vunpack.c.l.b16 %v96
    %v232 = vunpack.c.l.b16 %v97
    %v233 = vunpack.c.l.b16 %v98
    %v234 = vunpack.c.l.b16 %v99
    %v235 = vunpack.c.l.b16 %v100
    %v236 = vunpack.c.l.b16 %v101
    %v237 = vunpack.c.l.b16 %v102
    %v238 = vunpack.c.l.b16 %v103
    %v239 = vunpack.c.l.b16 %v104
    %v240 = vunpack.c.l.b16 %v105
    %v241 = vunpack.c.l.b16 %v106
    %v242 = vunpack.c.l.b16 %v107
    %v243 = vunpack.c.l.b16 %v108
    %v244 = vunpack.c.l.b16 %v109
    %v245 = vunpack.c.l.b16 %v110
    %v246 = vunpack.c.l.b16 %v111
    %v247 = vunpack.c.l.b16 %v112
    %v248 = vpack.c.b16 %v185, %v184
    %v249 = vpack.c.b16 %v187, %v186
    %v250 = vpack.c.b16 %v189, %v188
    %v251 = vpack.c.b16 %v191, %v190
    %v252 = vpack.c.b16 %v193, %v192
    %v253 = vpack.c.b16 %v195, %v194
    %v254 = vpack.c.b16 %v197, %v196
    %v255 = vpack.c.b16 %v199, %v198
    %v256 = vpack.c.b16 %v201, %v200
    %v257 = vpack.c.b16 %v203, %v202
    %v258 = vpack.c.b16 %v205, %v204
    %v259 = vpack.c.b16 %v207, %v206
    %v260 = vpack.c.b16 %v209, %v208
    %v261 = vpack.c.b16 %v211, %v210
    %v262 = vpack.c.b16 %v213, %v212
    %v263 = vpack.c.b16 %v215, %v214
    %v264 = vpack.c.b16 %v217, %v216
    %v265 = vpack.c.b16 %v219, %v218
    %v266 = vpack.c.b16 %v221, %v220
    %v267 = vpack.c.b16 %v223, %v222
    %v268 = vpack.c.b16 %v225, %v224
    %v269 = vpack.c.b16 %v227, %v226
    %v270 = vpack.c.b16 %v229, %v228
    %v271 = vpack.c.b16 %v231, %v230
    %v272 = vpack.c.b16 %v233, %v232
    %v273 = vpack.c.b16 %v235, %v234
    %v274 = vpack.c.b16 %v237, %v236
    %v275 = vpack.c.b16 %v239, %v238
    %v276 = vpack.c.b16 %v241, %v240
    %v277 = vpack.c.b16 %v243, %v242
    %v278 = vpack.c.b16 %v245, %v244
    %v279 = vpack.c.b16 %v247, %v246
    %312 = vmatprep.subr.bf16.mxu0 0
    %313 = vmatpush1.bf16.msra.mxu0 %v248
    %314 = vmatprep.subr.bf16.mxu0 0
    %315 = vmatpush1.bf16.msra.mxu0 %v249
    %316 = vmatprep.subr.bf16.mxu0 0
    %317 = vmatpush1.bf16.msra.mxu0 %v250
    %318 = vmatprep.subr.bf16.mxu0 0
    %319 = vmatpush1.bf16.msra.mxu0 %v251
    %320 = vmatprep.subr.bf16.mxu0 0
    %321 = vmatpush1.bf16.msra.mxu0 %v252
    %322 = vmatprep.subr.bf16.mxu0 0
    %323 = vmatpush1.bf16.msra.mxu0 %v253
    %324 = vmatprep.subr.bf16.mxu0 0
    %325 = vmatpush1.bf16.msra.mxu0 %v254
    %326 = vmatprep.subr.bf16.mxu0 0
    %327 = vmatpush1.bf16.msra.mxu0 %v255
    %328 = vmatprep.subr.bf16.mxu0 0
    %329 = vmatpush1.bf16.msra.mxu0 %v256
    %330 = vmatprep.subr.bf16.mxu0 0
    %331 = vmatpush1.bf16.msra.mxu0 %v257
    %332 = vmatprep.subr.bf16.mxu0 0
    %333 = vmatpush1.bf16.msra.mxu0 %v258
    %334 = vmatprep.subr.bf16.mxu0 0
    %335 = vmatpush1.bf16.msra.mxu0 %v259
    %336 = vmatprep.subr.bf16.mxu0 0
    %337 = vmatpush1.bf16.msra.mxu0 %v260
    %338 = vmatprep.subr.bf16.mxu0 0
    %339 = vmatpush1.bf16.msra.mxu0 %v261
    %340 = vmatprep.subr.bf16.mxu0 0
    %341 = vmatpush1.bf16.msra.mxu0 %v262
    %342 = vmatprep.subr.bf16.mxu0 0
    %343 = vmatpush1.bf16.msra.mxu0 %v263
    %344 = vmatprep.mubr.bf16.mxu0 %v46
    %345 = vmatmul.mubr.bf16.gmra.mrb[0].mxu0 %v45
    %v346 = vpop.f32.mrb[0].mxu0
    %v347 = vadd.f32 %v118, %v346
    %v348 = vpop.f32.mrb[0].mxu0
    %v349 = vpop.f32.mrb[0].mxu0
    %v350 = vadd.f32 %v118, %v349
    %v351 = vpop.f32.mrb[0].mxu0
    %352 = vdwg.mxu0
    %353 = vmatprep.subr.bf16.mxu0 0
    %354 = vmatpush1.bf16.msra.mxu0 %v264
    %355 = vmatprep.subr.bf16.mxu0 0
    %356 = vmatpush1.bf16.msra.mxu0 %v265
    %357 = vmatprep.subr.bf16.mxu0 0
    %358 = vmatpush1.bf16.msra.mxu0 %v266
    %359 = vmatprep.subr.bf16.mxu0 0
    %360 = vmatpush1.bf16.msra.mxu0 %v267
    %361 = vmatprep.subr.bf16.mxu0 0
    %362 = vmatpush1.bf16.msra.mxu0 %v268
    %363 = vmatprep.subr.bf16.mxu0 0
    %364 = vmatpush1.bf16.msra.mxu0 %v269
    %365 = vmatprep.subr.bf16.mxu0 0
    %366 = vmatpush1.bf16.msra.mxu0 %v270
    %367 = vmatprep.subr.bf16.mxu0 0
    %368 = vmatpush1.bf16.msra.mxu0 %v271
    %369 = vmatprep.subr.bf16.mxu0 0
    %370 = vmatpush1.bf16.msra.mxu0 %v272
    %371 = vmatprep.subr.bf16.mxu0 0
    %372 = vmatpush1.bf16.msra.mxu0 %v273
    %373 = vmatprep.subr.bf16.mxu0 0
    %374 = vmatpush1.bf16.msra.mxu0 %v274
    %375 = vmatprep.subr.bf16.mxu0 0
    %376 = vmatpush1.bf16.msra.mxu0 %v275
    %377 = vmatprep.subr.bf16.mxu0 0
    %378 = vmatpush1.bf16.msra.mxu0 %v276
    %379 = vmatprep.subr.bf16.mxu0 0
    %380 = vmatpush1.bf16.msra.mxu0 %v277
    %381 = vmatprep.subr.bf16.mxu0 0
    %382 = vmatpush1.bf16.msra.mxu0 %v278
    %383 = vmatprep.subr.bf16.mxu0 0
    %384 = vmatpush1.bf16.msra.mxu0 %v279
    %385 = vmatprep.mubr.bf16.mxu0 %v48
    %386 = vmatmul.mubr.bf16.gmra.mrb[0].mxu0 %v47
    %v387 = vpop.f32.mrb[0].mxu0
    %v388 = vadd.f32 %v347, %v387
    %v389 = vpop.f32.mrb[0].mxu0
    %v390 = vpop.f32.mrb[0].mxu0
    %v391 = vadd.f32 %v350, %v390
    %v392 = vpop.f32.mrb[0].mxu0
    %393 = vdwg.mxu0
    %v394 = vtanh.pop %v388
    %v395 = vtanh.pop %v391
    %v396 = vld [vmem:[%s3] sm:$0xff]
    %v397 = vld [vmem:[%s3 + $0x8] sm:$0xff]
    %v398 = vld [vmem:[%s3 + $0x10] sm:$0xff]
    %v399 = vld [vmem:[%s3 + $0x18] sm:$0xff]
    %v400 = vld [vmem:[%s3 + $0x20] sm:$0xff]
    %v401 = vld [vmem:[%s3 + $0x28] sm:$0xff]
    %v402 = vld [vmem:[%s3 + $0x30] sm:$0xff]
    %v403 = vld [vmem:[%s3 + $0x38] sm:$0xff]
    %v404 = vld [vmem:[%s3 + $0x40] sm:$0xff]
    %v405 = vld [vmem:[%s3 + $0x48] sm:$0xff]
    %v406 = vld [vmem:[%s3 + $0x50] sm:$0xff]
    %v407 = vld [vmem:[%s3 + $0x58] sm:$0xff]
    %v408 = vld [vmem:[%s3 + $0x60] sm:$0xff]
    %v409 = vld [vmem:[%s3 + $0x68] sm:$0xff]
    %v410 = vld [vmem:[%s3 + $0x70] sm:$0xff]
    %v411 = vld [vmem:[%s3 + $0x78] sm:$0xff]
    %412 = vmatprep.subr.mxu0 0.0
    %413 = vmatpush1.msra.mxu0 %v396
    %414 = vmatprep.subr.mxu0 0.0
    %415 = vmatpush1.msra.mxu0 %v397
    %416 = vmatprep.subr.mxu0 0.0
    %417 = vmatpush1.msra.mxu0 %v398
    %418 = vmatprep.subr.mxu0 0.0
    %419 = vmatpush1.msra.mxu0 %v399
    %420 = vmatprep.subr.mxu0 0.0
    %421 = vmatpush1.msra.mxu0 %v400
    %422 = vmatprep.subr.mxu0 0.0
    %423 = vmatpush1.msra.mxu0 %v401
    %424 = vmatprep.subr.mxu0 0.0
    %425 = vmatpush1.msra.mxu0 %v402
    %426 = vmatprep.subr.mxu0 0.0
    %427 = vmatpush1.msra.mxu0 %v403
    %428 = vmatprep.subr.mxu0 0.0
    %429 = vmatpush1.msra.mxu0 %v404
    %430 = vmatprep.subr.mxu0 0.0
    %431 = vmatpush1.msra.mxu0 %v405
    %432 = vmatprep.subr.mxu0 0.0
    %433 = vmatpush1.msra.mxu0 %v406
    %434 = vmatprep.subr.mxu0 0.0
    %435 = vmatpush1.msra.mxu0 %v407
    %436 = vmatprep.subr.mxu0 0.0
    %437 = vmatpush1.msra.mxu0 %v408
    %438 = vmatprep.subr.mxu0 0.0
    %439 = vmatpush1.msra.mxu0 %v409
    %440 = vmatprep.subr.mxu0 0.0
    %441 = vmatpush1.msra.mxu0 %v410
    %442 = vmatprep.subr.mxu0 0.0
    %443 = vmatpush1.msra.mxu0 %v411
    %444 = vmatprep.subr.mxu0 0.0
    %445 = vmatpush1.msra.mxu0 0.0
    %446 = vmatprep.subr.mxu0 0.0
    %447 = vmatpush1.msra.mxu0 0.0
    %448 = vmatprep.subr.mxu0 0.0
    %449 = vmatpush1.msra.mxu0 0.0
    %450 = vmatprep.subr.mxu0 0.0
    %451 = vmatpush1.msra.mxu0 0.0
    %452 = vmatprep.subr.mxu0 0.0
    %453 = vmatpush1.msra.mxu0 0.0
    %454 = vmatprep.subr.mxu0 0.0
    %455 = vmatpush1.msra.mxu0 0.0
    %456 = vmatprep.subr.mxu0 0.0
    %457 = vmatpush1.msra.mxu0 0.0
    %458 = vmatprep.subr.mxu0 0.0
    %459 = vmatpush1.msra.mxu0 0.0
    %460 = vmatprep.subr.mxu0 0.0
    %461 = vmatpush1.msra.mxu0 0.0
    %462 = vmatprep.subr.mxu0 0.0
    %463 = vmatpush1.msra.mxu0 0.0
    %464 = vmatprep.subr.mxu0 0.0
    %465 = vmatpush1.msra.mxu0 0.0
    %466 = vmatprep.subr.mxu0 0.0
    %467 = vmatpush1.msra.mxu0 0.0
    %468 = vmatprep.subr.mxu0 0.0
    %469 = vmatpush1.msra.mxu0 0.0
    %470 = vmatprep.subr.mxu0 0.0
    %471 = vmatpush1.msra.mxu0 0.0
    %472 = vmatprep.subr.mxu0 0.0
    %473 = vmatpush1.msra.mxu0 0.0
    %474 = vmatprep.subr.mxu0 0.0
    %475 = vmatpush1.msra.mxu0 0.0
    %476 = vmatprep.mubr.f32.mxu0 0.0
    %477 = vmatmul.mubr.f32.gmra.mrb[0].mxu0 %v394
    %v478 = vpop.f32.mrb[0].mxu0
    %v479 = vadd.f32 0.0, %v478
    %v480 = vpop.f32.mrb[0].mxu0
    %481 = vmatprep.mubr.f32.mxu0 0.0
    %482 = vmatmul.mubr.f32.gmra.mrb[0].mxu0 %v395
    %v483 = vpop.f32.mrb[0].mxu0
    %v484 = vadd.f32 0.0, %v483
    %v485 = vpop.f32.mrb[0].mxu0
    %486 = vdwg.mxu0
    %487 = vxpose.xlu0.b32.start [1/16] %v479, 128
    %488 = vxpose.xlu0.b32.cont [2/16] %v484, 128
    %489 = vxpose.xlu0.b32.cont [3/16] 0.0, 128
    %490 = vxpose.xlu0.b32.cont [4/16] 0.0, 128
    %491 = vxpose.xlu0.b32.cont [5/16] 0.0, 128
    %492 = vxpose.xlu0.b32.cont [6/16] 0.0, 128
    %493 = vxpose.xlu0.b32.cont [7/16] 0.0, 128
    %494 = vxpose.xlu0.b32.cont [8/16] 0.0, 128
    %495 = vxpose.xlu0.b32.cont [9/16] 0.0, 128
    %496 = vxpose.xlu0.b32.cont [10/16] 0.0, 128
    %497 = vxpose.xlu0.b32.cont [11/16] 0.0, 128
    %498 = vxpose.xlu0.b32.cont [12/16] 0.0, 128
    %499 = vxpose.xlu0.b32.cont [13/16] 0.0, 128
    %500 = vxpose.xlu0.b32.cont [14/16] 0.0, 128
    %501 = vxpose.xlu0.b32.cont [15/16] 0.0, 128
    %502 = vxpose.xlu0.b32.end [16/16] 0.0, 128
    %v503 = vpop.trf.xlu0
    %v504 = vpop.trf.xlu0
    %v505 = vpop.trf.xlu0
    %v506 = vpop.trf.xlu0
    %v507 = vpop.trf.xlu0
    %v508 = vpop.trf.xlu0
    %v509 = vpop.trf.xlu0
    %v510 = vpop.trf.xlu0
    %v511 = vpop.trf.xlu0
    %v512 = vpop.trf.xlu0
    %v513 = vpop.trf.xlu0
    %v514 = vpop.trf.xlu0
    %v515 = vpop.trf.xlu0
    %v516 = vpop.trf.xlu0
    %v517 = vpop.trf.xlu0
    %v518 = vpop.trf.xlu0
    %s519 = sld [smem:[#allocation2]]
    %v520 = vstv %s519
    %v521 = vadd.f32 %v503, %v520
    %v522 = vxor.u32 %v521, 2147483648
    %v523 = vmul.f32 %v522, 1.442695
    %v524 = vpow.pop %v523
    %v525 = vadd.f32 %v524, 1.0
    %v526 = vrcp.pop %v525
    %v527 = vmul.f32 1.0, %v526
    %vm528 = vcmask 122880
    %529 = vst.msk [vmem:[#allocation6] sm:$0x1] %vm528, %v527
    // Predicated region
    $region26: #{tpu_custom_call.1} parent=1 // pred_check
      _
    $region27: #{tpu_custom_call.1} parent=1 // pred_check_branch
      %531 = sbr.rel (0) target = $region29
    $region28: #{tpu_custom_call.1} parent=1 // pred_region
      %s533 = ssub.s32 16, 16
      %534 = vsyncadd [#allocation5], %s533
      %s536 = sshll.u32 [#allocation6], 4
      %s537 = int_to_ptr.vmem [resolvable:$true] %s536
      %539 = dma.vmem_to_hbm [thread:$0]  %s537, 16, %s5, [#allocation5]
    $region29: #{tpu_custom_call.1} parent=1 // pred_fallthru
      _
    // Predicated region
    $region30: #{tpu_custom_call.1} parent=1 // pred_check
      _
    $region31: #{tpu_custom_call.1} parent=1 // pred_check_branch
      %541 = sbr.rel (0) target = $region33
    $region32: #{tpu_custom_call.1} parent=1 // pred_region
      %542 = dma.done [#allocation5], 16
    $region33: #{tpu_custom_call.1} parent=1 // pred_fallthru
      _
    %543 = vsyncpa [#allocation4], 1
    %544 = vsyncpa [#allocation5], 1

</llo_original>
